<compile_context>
chip_gen: v7x
topology: tpu7x:2x2x1
jax: 0.10.0
libtpu: 0.0.40
codegen_flags: <defaults>
</compile_context>

<pallas_src>
import functools

import jax
import jax.numpy as jnp
from jax.experimental import pallas as pl
from jax.experimental.pallas import tpu as pltpu


def adapter_kernel(x_ref, w1_ref, w2_ref, o_ref):
    # Channel-major: pixel axis (last dim, multiple of 128) is lane-dense, so the
    # output store is a full-width unmasked vst instead of an 8-lane vst.msk.
    # x_ref:  (Cin,  TM)   one batch image's channel-major pixel tile
    # w1_ref: (width, Cin) conv1 weight (resident; constant block index)
    # w2_ref: (Cout, width) conv2 weight with `se` pre-folded along Cout rows
    # o_ref:  (Cout, TM)
    h = jnp.dot(w1_ref[...], x_ref[...], preferred_element_type=jnp.float32)
    h = jnp.maximum(h, 0.0)                                        # ReLU
    y = jnp.dot(w2_ref[...], h, preferred_element_type=jnp.float32)
    o_ref[...] = y.astype(o_ref.dtype)


def _pick_tile(hw, cap=2048):
    # Largest multiple of 128 that divides hw, capped so per-tile VMEM stays tiny
    # (tm*(Cin+Cout)*4 bytes, double-buffered) and long grids keep >=2 parallel
    # steps for v7x's two TensorCores.
    tm = min(hw, cap)
    tm -= tm % 128
    while hw % tm:
        tm -= 128
    return tm


@functools.partial(jax.jit, static_argnames=("padding",))
def test_adapter_forward(x_nchw, w1, w2, se, *, padding=1):
    """x_nchw: (N, Cin, H, W); w1: (width, Cin, 1, 1); w2: (Cout, width, 1, 1);
    se: (1, Cout, 1, 1). Returns (N, Cout, H+2*padding, W+2*padding)."""
    N, Cin, H, W = x_nchw.shape
    width = w1.shape[0]
    Cout = w2.shape[0]
    HW = H * W

    # Zero-copy reshapes only — no transposes, no extra HBM passes.
    x_cm = x_nchw.reshape(N, Cin, HW)                  # per-batch X^T: (Cin, HW)
    w1_mat = w1.reshape(width, Cin)                    # (width, Cin)
    # Fold se into conv2's weight: (W2 @ h) * se == (W2 * se_col) @ h.
    w2_mat = w2.reshape(Cout, width) * se.reshape(Cout, 1)

    # TODO(synk): pad H*W to a multiple of 128 (masked last tile) for general shapes.
    assert HW % 128 == 0, "H*W must be a multiple of 128 in this demo"
    tm = _pick_tile(HW)

    out_cm = pl.pallas_call(
        adapter_kernel,
        out_shape=jax.ShapeDtypeStruct((N, Cout, HW), x_nchw.dtype),
        grid=(N, HW // tm),
        in_specs=[
            pl.BlockSpec((None, Cin, tm), lambda n, j: (n, 0, j)),
            # Constant block index -> weights stay resident in VMEM (no re-DMA).
            pl.BlockSpec((width, Cin), lambda n, j: (0, 0)),
            pl.BlockSpec((Cout, width), lambda n, j: (0, 0)),
        ],
        out_specs=pl.BlockSpec((None, Cout, tm), lambda n, j: (n, 0, j)),
        compiler_params=pltpu.CompilerParams(
            dimension_semantics=("parallel", "parallel")),
    )(x_cm, w1_mat, w2_mat)

    # (N, Cout, HW) -> NCHW is free; conv2's padding is a zero ring (fused under jit).
    out_nchw = out_cm.reshape(N, Cout, H, W)
    if padding:
        out_nchw = jnp.pad(
            out_nchw, ((0, 0), (0, 0), (padding, padding), (padding, padding)))
    return out_nchw


if __name__ == "__main__":
    # Module config (defaults): inplanes=4, width=32, outplanes=8,
    # kernel_size=1, padding=1, stride=1.
    N, Cin, H, W = 2, 4, 16, 16
    width, Cout = 32, 8

    key = jax.random.PRNGKey(0)
    k_x, k_w1, k_w2, k_se = jax.random.split(key, 4)

    x = jax.random.normal(k_x, (N, Cin, H, W), dtype=jnp.float32)
    # Deterministic synthetic parameters (shapes per __init__).
    w1 = jax.random.normal(k_w1, (width, Cin, 1, 1), dtype=jnp.float32) * 0.1
    w2 = jax.random.normal(k_w2, (Cout, width, 1, 1), dtype=jnp.float32) * 0.1
    # NOTE: __init__ sets se to zeros; use random values so the kernel output is
    # non-trivial (se is a learnable parameter — only its shape is fixed).
    se = jax.random.normal(k_se, (1, Cout, 1, 1), dtype=jnp.float32)

    out = test_adapter_forward(x, w1, w2, se, padding=1)
    out = jax.block_until_ready(out)

    # Pure-JAX reference check.
    h_ref = jnp.einsum("nchw,oc->nohw", x, w1.reshape(width, Cin))
    h_ref = jnp.maximum(h_ref, 0.0)
    y_ref = jnp.einsum("nchw,oc->nohw", h_ref, w2.reshape(Cout, width))
    y_ref = y_ref * se
    y_ref = jnp.pad(y_ref, ((0, 0), (0, 0), (1, 1), (1, 1)))

    assert out.shape == (N, Cout, H + 2, W + 2), out.shape
    assert jnp.allclose(out, y_ref, atol=1e-5, rtol=1e-5)
    print("KERNEL_OK")
</pallas_src>

<mosaic_0001>
module attributes {stable_mosaic.version = 11 : i64} {
  func.func @adapter_kernel(%arg0: i32, %arg1: i32, %arg2: memref<1x4x256xf32, #tpu.memory_space<vmem>>, %arg3: memref<32x4xf32, #tpu.memory_space<vmem>>, %arg4: memref<8x32xf32, #tpu.memory_space<vmem>>, %arg5: memref<1x8x256xf32, #tpu.memory_space<vmem>>) attributes {dimension_semantics = [#tpu.dimension_semantics<parallel>, #tpu.dimension_semantics<parallel>], iteration_bounds = array<i64: 2, 1>, scalar_prefetch = 0 : i64, scratch_operands = 0 : i64, tpu.core_type = #tpu.core_type<tc>, window_params = [{transform_indices = @transform_0, window_bounds = array<i64: 1, 4, 256>}, {pipeline_mode = #tpu.pipeline_mode<synchronous>, transform_indices = @transform_1, window_bounds = array<i64: 32, 4>}, {pipeline_mode = #tpu.pipeline_mode<synchronous>, transform_indices = @transform_2, window_bounds = array<i64: 8, 32>}, {transform_indices = @transform_3, window_bounds = array<i64: 1, 8, 256>}]} {
    %c0 = arith.constant 0 : index
    %c0_0 = arith.constant 0 : index
    %0 = vector.load %arg3[%c0, %c0_0] : memref<32x4xf32, #tpu.memory_space<vmem>>, vector<32x4xf32>
    %c0_1 = arith.constant 0 : index
    %c0_2 = arith.constant 0 : index
    %c0_3 = arith.constant 0 : index
    %1 = vector.load %arg2[%c0_1, %c0_2, %c0_3] : memref<1x4x256xf32, #tpu.memory_space<vmem>>, vector<1x4x256xf32>
    %2 = vector.shape_cast %1 : vector<1x4x256xf32> to vector<4x256xf32>
    %cst = arith.constant dense<0.000000e+00> : vector<32x256xf32>
    %3 = tpu.matmul %0, %2, %cst {dimension_numbers = #tpu.dot_dimension_numbers<[1], [0], [0], [1], [0, 0, 1, 1], [], []>} : vector<32x4xf32>, vector<4x256xf32>, vector<32x256xf32> -> vector<32x256xf32>
    %cst_4 = arith.constant 0.000000e+00 : f32
    %4 = vector.broadcast %cst_4 : f32 to vector<32x256xf32>
    %5 = arith.maximumf %3, %4 : vector<32x256xf32>
    %c0_5 = arith.constant 0 : index
    %c0_6 = arith.constant 0 : index
    %6 = vector.load %arg4[%c0_5, %c0_6] : memref<8x32xf32, #tpu.memory_space<vmem>>, vector<8x32xf32>
    %cst_7 = arith.constant dense<0.000000e+00> : vector<8x256xf32>
    %7 = tpu.matmul %6, %5, %cst_7 {dimension_numbers = #tpu.dot_dimension_numbers<[1], [0], [0], [1], [0, 0, 1, 1], [], []>} : vector<8x32xf32>, vector<32x256xf32>, vector<8x256xf32> -> vector<8x256xf32>
    %c0_8 = arith.constant 0 : index
    %c0_9 = arith.constant 0 : index
    %c0_10 = arith.constant 0 : index
    %8 = vector.load %arg5[%c0_8, %c0_9, %c0_10] : memref<1x8x256xf32, #tpu.memory_space<vmem>>, vector<1x8x256xf32>
    %9 = vector.shape_cast %8 : vector<1x8x256xf32> to vector<8x256xf32>
    %10 = vector.shape_cast %7 : vector<8x256xf32> to vector<1x8x256xf32>
    tpu.vector_store %arg5[%c0_8, %c0_9, %c0_10], %10 {strides = array<i32>} : memref<1x8x256xf32, #tpu.memory_space<vmem>>, vector<1x8x256xf32>,
    return
  }
  func.func @transform_0(%arg0: i32, %arg1: i32) -> (i32, i32, i32) {
    %c0_i32 = arith.constant 0 : i32
    %c0_i32_0 = arith.constant 0 : i32
    return %arg0, %c0_i32, %arg1 : i32, i32, i32
  }
  func.func @transform_1(%arg0: i32, %arg1: i32) -> (i32, i32) {
    %c0_i32 = arith.constant 0 : i32
    %c0_i32_0 = arith.constant 0 : i32
    %c0_i32_1 = arith.constant 0 : i32
    return %c0_i32, %c0_i32_0 : i32, i32
  }
  func.func @transform_2(%arg0: i32, %arg1: i32) -> (i32, i32) {
    %c0_i32 = arith.constant 0 : i32
    %c0_i32_0 = arith.constant 0 : i32
    %c0_i32_1 = arith.constant 0 : i32
    return %c0_i32, %c0_i32_0 : i32, i32
  }
  func.func @transform_3(%arg0: i32, %arg1: i32) -> (i32, i32, i32) {
    %c0_i32 = arith.constant 0 : i32
    %c0_i32_0 = arith.constant 0 : i32
    return %arg0, %c0_i32, %arg1 : i32, i32, i32
  }
}

</mosaic_0001>

<llo_original>
// kernel: test_adapter_forward.1
$region0: #{test_adapter_forward.1}
  #allocation0 [shape = 'u32[]', space=smem, size = 0x4, offset = 0x4, fixed_abs, tag = 'smem constant byte address 0x4 - core index']
  #allocation1 [shape = 'u32[144,128]{1,0:T(1,128)}', space=vmem, size = 0x12000, scoped, tag = 'internal scratch']
  %s0 = inlined_call_operand.vmem [shape: f32[2,4,256], index: 0, kind: input, shape index: {}]
  %s1 = inlined_call_operand.vmem [shape: f32[32,4], index: 1, kind: input, shape index: {}]
  %s2 = inlined_call_operand.vmem [shape: f32[8,32], index: 2, kind: input, shape index: {}]
  %s3 = inlined_call_operand.vmem [shape: f32[2,8,256], index: 3, kind: output, shape index: {}]
  %s4 = sld [smem:[#allocation0]]
  $region45: #{test_adapter_forward.1} parent=0
    _
  %s6 = ssub.s32 1, %s4
  %s7 = scalar_select 0, %s6, %s4
  loop: start=0, step=1, limit=4
  $region2: #{test_adapter_forward.1} parent=0 // loop_pre_header
    _
  $region3: #{test_adapter_forward.1} parent=0 // loop_header
    %s9 = sphi 0, %s13
    %p10 = scmp.ge.s32.totalorder %s9, 4
    %s16 = sphi 0, %s28
    %s17 = sphi 0, %s24
    %s18 = sphi 0, %s16
    %s19 = sphi 0, %s17
    %s20 = sphi 0, %s18
    %s21 = sphi 0, %s19
    %s33 = sphi 0, %s35
    %s36 = sphi 0, %s33
    %s37 = sphi 0, %s36
    %s53 = sphi 0, %s37
    %s57 = sphi 0, %s57
    %s59 = sphi 0, %s57
    %s60 = sphi 0, %s59
    %s74 = sphi 0, %s60
    %s78 = sphi 0, %s78
    %s80 = sphi 0, %s78
    %s81 = sphi 0, %s80
    %s95 = sphi 0, %s81
    %s103 = sphi 0, %s105
    %s106 = sphi 0, %s103
    %s107 = sphi 0, %s106
    %s123 = sphi 0, %s107
  $region4: #{test_adapter_forward.1} parent=0 // loop_header_branch
    %12 = sbr.rel (%p10) target = $region8
  $region5: #{test_adapter_forward.1} parent=0 // loop_body
    %s14 = ssub.s32 %s9, 1
    %s15 = ssub.s32 %s9, 2
    %s22 = sadd.s32 1, %s17
    %p23 = scmp.ge.s32.totalorder %s22, 1
    %s24 = scalar_select %p23, 0, %s22
    %s25 = sadd.s32 1, %s16
    %s26 = scalar_select %p23, %s25, %s16
    %p27 = scmp.ge.s32.totalorder %s26, 2
    %s28 = scalar_select %p27, 0, %s26
    %s29 = ssub.s32 %s16, %s28
    %s30 = ssub.s32 %s17, %s24
    %s31 = sor.u32 %s29, %s30
    %p32 = scmp.eq.s32.totalorder %s31, 0
    %s34 = sadd.s32 %s33, 1
    %s35 = scalar_select %p32, %s33, %s34
    %p38 = pneg %p32
    %p39 = scmp.eq.s32.totalorder %s9, 1
    %p40 = por %p38, %p39
    %p41 = scmp.ne.s32.totalorder %s33, %s36
    %p42 = scmp.eq.s32.totalorder %s9, 0
    %p43 = por %p41, %p42
    %p44 = scmp.ne.s32.totalorder %s33, %s36
    %p45 = scmp.eq.s32.totalorder %s14, 1
    %p46 = por %p44, %p45
    %p47 = scmp.ne.s32.totalorder %s36, %s37
    %p48 = scmp.eq.s32.totalorder %s14, 0
    %p49 = por %p47, %p48
    %p50 = scmp.ne.s32.totalorder %s36, %s37
    %p51 = scmp.eq.s32.totalorder %s15, 1
    %p52 = por %p50, %p51
    %p54 = scmp.ne.s32.totalorder %s37, %s53
    %p55 = scmp.eq.s32.totalorder %s15, 0
    %p56 = por %p54, %p55
    %s58 = sadd.s32 %s57, 1
    %p61 = scmp.eq.s32.totalorder %s9, 1
    %p62 = scmp.ne.s32.totalorder %s57, %s59
    %p63 = scmp.eq.s32.totalorder %s9, 0
    %p64 = por %p62, %p63
    %p65 = scmp.ne.s32.totalorder %s57, %s59
    %p66 = scmp.eq.s32.totalorder %s14, 1
    %p67 = por %p65, %p66
    %p68 = scmp.ne.s32.totalorder %s59, %s60
    %p69 = scmp.eq.s32.totalorder %s14, 0
    %p70 = por %p68, %p69
    %p71 = scmp.ne.s32.totalorder %s59, %s60
    %p72 = scmp.eq.s32.totalorder %s15, 1
    %p73 = por %p71, %p72
    %p75 = scmp.ne.s32.totalorder %s60, %s74
    %p76 = scmp.eq.s32.totalorder %s15, 0
    %p77 = por %p75, %p76
    %s79 = sadd.s32 %s78, 1
    %p82 = scmp.eq.s32.totalorder %s9, 1
    %p83 = scmp.ne.s32.totalorder %s78, %s80
    %p84 = scmp.eq.s32.totalorder %s9, 0
    %p85 = por %p83, %p84
    %p86 = scmp.ne.s32.totalorder %s78, %s80
    %p87 = scmp.eq.s32.totalorder %s14, 1
    %p88 = por %p86, %p87
    %p89 = scmp.ne.s32.totalorder %s80, %s81
    %p90 = scmp.eq.s32.totalorder %s14, 0
    %p91 = por %p89, %p90
    %p92 = scmp.ne.s32.totalorder %s80, %s81
    %p93 = scmp.eq.s32.totalorder %s15, 1
    %p94 = por %p92, %p93
    %p96 = scmp.ne.s32.totalorder %s81, %s95
    %p97 = scmp.eq.s32.totalorder %s15, 0
    %p98 = por %p96, %p97
    %s99 = ssub.s32 %s16, %s28
    %s100 = ssub.s32 %s17, %s24
    %s101 = sor.u32 %s99, %s100
    %p102 = scmp.eq.s32.totalorder %s101, 0
    %s104 = sadd.s32 %s103, 1
    %s105 = scalar_select %p102, %s103, %s104
    %p108 = pneg %p102
    %p109 = scmp.eq.s32.totalorder %s9, 1
    %p110 = por %p108, %p109
    %p111 = scmp.ne.s32.totalorder %s103, %s106
    %p112 = scmp.eq.s32.totalorder %s9, 0
    %p113 = por %p111, %p112
    %p114 = scmp.ne.s32.totalorder %s103, %s106
    %p115 = scmp.eq.s32.totalorder %s14, 1
    %p116 = por %p114, %p115
    %p117 = scmp.ne.s32.totalorder %s106, %s107
    %p118 = scmp.eq.s32.totalorder %s14, 0
    %p119 = por %p117, %p118
    %p120 = scmp.ne.s32.totalorder %s106, %s107
    %p121 = scmp.eq.s32.totalorder %s15, 1
    %p122 = por %p120, %p121
    %p124 = scmp.ne.s32.totalorder %s107, %s123
    %p125 = scmp.eq.s32.totalorder %s15, 0
    %p126 = por %p124, %p125
    %p127 = scmp.le.s32.totalorder 1, %s9
    %p128 = scmp.lt.s32.totalorder %s9, 3
    %p129 = pnand %p127, %p128
    %p130 = pneg %p129
    // Predicated region
    $region9: #{test_adapter_forward.1} parent=5 // pred_check
      _
    $region10: #{test_adapter_forward.1} parent=5 // pred_check_branch
      %132 = sbr.rel (%p129) target = $region12
    $region11: #{test_adapter_forward.1} parent=5 // pred_region
      %s133 = ssub.s32 %s9, 1
      // Predicated region
      $region13: #{test_adapter_forward.1} parent=11 // pred_check
        %p134 = pneg %p70
      $region14: #{test_adapter_forward.1} parent=11 // pred_check_branch
        %136 = sbr.rel (%p134) target = $region16
      $region15: #{test_adapter_forward.1} parent=11 // pred_region
        _
      $region16: #{test_adapter_forward.1} parent=11 // pred_fallthru
        _
      // Predicated region
      $region17: #{test_adapter_forward.1} parent=11 // pred_check
        %p137 = pneg %p91
      $region18: #{test_adapter_forward.1} parent=11 // pred_check_branch
        %139 = sbr.rel (%p137) target = $region20
      $region19: #{test_adapter_forward.1} parent=11 // pred_region
        _
      $region20: #{test_adapter_forward.1} parent=11 // pred_fallthru
        _
    $region12: #{test_adapter_forward.1} parent=5 // pred_fallthru
      _
    %p140 = scmp.lt.s32.totalorder %s9, 2
    // Predicated region
    $region21: #{test_adapter_forward.1} parent=5 // pred_check
      %p141 = pneg %p140
    $region22: #{test_adapter_forward.1} parent=5 // pred_check_branch
      %143 = sbr.rel (%p141) target = $region24
    $region23: #{test_adapter_forward.1} parent=5 // pred_region
      // Predicated region
      $region25: #{test_adapter_forward.1} parent=23 // pred_check
        %p144 = pneg %p43
      $region26: #{test_adapter_forward.1} parent=23 // pred_check_branch
        %146 = sbr.rel (%p144) target = $region28
      $region27: #{test_adapter_forward.1} parent=23 // pred_region
        %s147 = smul.u32 2, %s17
        %p148 = scmp.lt.s32.totalorder %s16, 1
        %s149 = scalar_select %p148, %s16, 1
        %p150 = scmp.lt.s32.totalorder %s147, 1
        %s151 = scalar_select %p150, %s147, 1
        %s152 = smul.addr %s149, 2
        %s153 = sadd.s32 %s151, %s152
        %s154 = smul.addr %s153, 4
        %s155 = scalar_lea.vmem %s0, %s154
        %s156 = smul.u32 2, %s17
      $region28: #{test_adapter_forward.1} parent=23 // pred_fallthru
        _
    $region24: #{test_adapter_forward.1} parent=5 // pred_fallthru
      _
    %p157 = scmp.le.s32.totalorder 1, %s9
    %p158 = scmp.lt.s32.totalorder %s9, 3
    %p159 = pnand %p157, %p158
    %p160 = pneg %p159
    // Predicated region
    $region29: #{test_adapter_forward.1} parent=5 // pred_check
      _
    $region30: #{test_adapter_forward.1} parent=5 // pred_check_branch
      %162 = sbr.rel (%p159) target = $region32
    $region31: #{test_adapter_forward.1} parent=5 // pred_region
      %s163 = ssub.s32 %s9, 1
      %s164 = smul.u32 2, %s19
      %p165 = scmp.lt.s32.totalorder %s18, 1
      %s166 = scalar_select %p165, %s18, 1
      %p167 = scmp.lt.s32.totalorder %s164, 1
      %s168 = scalar_select %p167, %s164, 1
      %s169 = smul.addr %s166, 2
      %s170 = sadd.s32 %s168, %s169
      %s171 = smul.addr %s170, 4
      %s172 = scalar_lea.vmem %s0, %s171
      %p173 = pneg %p49
      %p174 = pneg %p46
      %p175 = pneg %p70
      %p176 = pneg %p67
      %p177 = pneg %p91
      %p178 = pneg %p88
      %p179 = pneg %p119
      %p180 = pneg %p116
      %s181 = smul.u32 2, %s19
      %p182 = scmp.lt.s32.totalorder %s18, 1
      %s183 = scalar_select %p182, %s18, 1
      %p184 = scmp.lt.s32.totalorder %s181, 1
      %s185 = scalar_select %p184, %s181, 1
      %s186 = smul.addr %s183, 2
      %s187 = sadd.s32 %s185, %s186
      %s188 = smul.addr %s187, 8
      %s189 = scalar_lea.vmem %s3, %s188
      %s190 = smul.u32 2, %s19
      %p191 = scmp.lt.s32.totalorder %s18, 1
      %s192 = scalar_select %p191, %s18, 1
      %p193 = scmp.lt.s32.totalorder %s190, 1
      %s194 = scalar_select %p193, %s190, 1
      %s195 = smul.addr %s192, 2
      %s196 = sadd.s32 %s194, %s195
      %s197 = smul.addr %s196, 4
      %s198 = scalar_lea.vmem %s0, %s197
      %s199 = smul.u32 2, %s19
      %s200 = smul.u32 2, %s19
      %p201 = scmp.lt.s32.totalorder %s18, 1
      %s202 = scalar_select %p201, %s18, 1
      %p203 = scmp.lt.s32.totalorder %s200, 1
      %s204 = scalar_select %p203, %s200, 1
      %s205 = smul.addr %s202, 2
      %s206 = sadd.s32 %s204, %s205
      %s207 = smul.addr %s206, 8
      %s208 = scalar_lea.vmem %s3, %s207
      %s209 = smul.u32 2, %s19
      %v210 = vld [vmem:[%s1] sm:$0xff]
      %v211 = vld [vmem:[%s1 + $0x8] sm:$0xff]
      %v212 = vld [vmem:[%s1 + $0x10] sm:$0xff]
      %v213 = vld [vmem:[%s1 + $0x18] sm:$0xff]
      %v214 = vld [vmem:[%s198] sm:$0xff]
      %v216 = vcombine.high %v214, %v214
      %vm217 = vcmask 31744
      %v219 = vsel %vm217, %v210, 0
      %v222 = vsel %vm217, %v211, 0
      %v225 = vsel %vm217, %v212, 0
      %v228 = vsel %vm217, %v213, 0
      %vm230 = vcmask 1043456
      %v231 = vsel %vm230, %v214, 0
      %v233 = vsel %vm230, %v216, 0
      %235 = vmatprep.subr.mxu0 %v233
      %236 = vmatpush1.msra.mxu0 %v231
      %237 = vmatprep.subr.mxu0 0.0
      %238 = vmatpush1.msra.mxu0 0.0
      %239 = vmatprep.subr.mxu0 0.0
      %240 = vmatpush1.msra.mxu0 0.0
      %241 = vmatprep.subr.mxu0 0.0
      %242 = vmatpush1.msra.mxu0 0.0
      %243 = vmatprep.subr.mxu0 0.0
      %244 = vmatpush1.msra.mxu0 0.0
      %245 = vmatprep.subr.mxu0 0.0
      %246 = vmatpush1.msra.mxu0 0.0
      %247 = vmatprep.subr.mxu0 0.0
      %248 = vmatpush1.msra.mxu0 0.0
      %249 = vmatprep.subr.mxu0 0.0
      %250 = vmatpush1.msra.mxu0 0.0
      %251 = vmatprep.subr.mxu0 0.0
      %252 = vmatpush1.msra.mxu0 0.0
      %253 = vmatprep.subr.mxu0 0.0
      %254 = vmatpush1.msra.mxu0 0.0
      %255 = vmatprep.subr.mxu0 0.0
      %256 = vmatpush1.msra.mxu0 0.0
      %257 = vmatprep.subr.mxu0 0.0
      %258 = vmatpush1.msra.mxu0 0.0
      %259 = vmatprep.subr.mxu0 0.0
      %260 = vmatpush1.msra.mxu0 0.0
      %261 = vmatprep.subr.mxu0 0.0
      %262 = vmatpush1.msra.mxu0 0.0
      %263 = vmatprep.subr.mxu0 0.0
      %264 = vmatpush1.msra.mxu0 0.0
      %265 = vmatprep.subr.mxu0 0.0
      %266 = vmatpush1.msra.mxu0 0.0
      %267 = vmatprep.subr.mxu0 0.0
      %268 = vmatpush1.msra.mxu0 0.0
      %269 = vmatprep.subr.mxu0 0.0
      %270 = vmatpush1.msra.mxu0 0.0
      %271 = vmatprep.subr.mxu0 0.0
      %272 = vmatpush1.msra.mxu0 0.0
      %273 = vmatprep.subr.mxu0 0.0
      %274 = vmatpush1.msra.mxu0 0.0
      %275 = vmatprep.subr.mxu0 0.0
      %276 = vmatpush1.msra.mxu0 0.0
      %277 = vmatprep.subr.mxu0 0.0
      %278 = vmatpush1.msra.mxu0 0.0
      %279 = vmatprep.subr.mxu0 0.0
      %280 = vmatpush1.msra.mxu0 0.0
      %281 = vmatprep.subr.mxu0 0.0
      %282 = vmatpush1.msra.mxu0 0.0
      %283 = vmatprep.subr.mxu0 0.0
      %284 = vmatpush1.msra.mxu0 0.0
      %285 = vmatprep.subr.mxu0 0.0
      %286 = vmatpush1.msra.mxu0 0.0
      %287 = vmatprep.subr.mxu0 0.0
      %288 = vmatpush1.msra.mxu0 0.0
      %289 = vmatprep.subr.mxu0 0.0
      %290 = vmatpush1.msra.mxu0 0.0
      %291 = vmatprep.subr.mxu0 0.0
      %292 = vmatpush1.msra.mxu0 0.0
      %293 = vmatprep.subr.mxu0 0.0
      %294 = vmatpush1.msra.mxu0 0.0
      %295 = vmatprep.subr.mxu0 0.0
      %296 = vmatpush1.msra.mxu0 0.0
      %297 = vmatprep.subr.mxu0 0.0
      %298 = vmatpush1.msra.mxu0 0.0
      %299 = vmatprep.mubr.f32.mxu0 0.0
      %300 = vmatmul.mubr.f32.gmra.mrb[0].mxu0 %v219
      %v301 = vpop.f32.mrb[0].mxu0
      %v302 = vadd.f32 0.0, %v301
      %v303 = vpop.f32.mrb[0].mxu0
      %v304 = vadd.f32 0.0, %v303
      %305 = vmatprep.mubr.f32.mxu0 0.0
      %306 = vmatmul.mubr.f32.gmra.mrb[0].mxu0 %v222
      %v307 = vpop.f32.mrb[0].mxu0
      %v308 = vadd.f32 0.0, %v307
      %v309 = vpop.f32.mrb[0].mxu0
      %v310 = vadd.f32 0.0, %v309
      %311 = vmatprep.mubr.f32.mxu0 0.0
      %312 = vmatmul.mubr.f32.gmra.mrb[0].mxu0 %v225
      %v313 = vpop.f32.mrb[0].mxu0
      %v314 = vadd.f32 0.0, %v313
      %v315 = vpop.f32.mrb[0].mxu0
      %v316 = vadd.f32 0.0, %v315
      %317 = vmatprep.mubr.f32.mxu0 0.0
      %318 = vmatmul.mubr.f32.gmra.mrb[0].mxu0 %v228
      %v319 = vpop.f32.mrb[0].mxu0
      %v320 = vadd.f32 0.0, %v319
      %v321 = vpop.f32.mrb[0].mxu0
      %v322 = vadd.f32 0.0, %v321
      %323 = vdwg.mxu0
      %v324 = vmax.f32 %v302, 0.0
      %v325 = vmax.f32 %v304, 0.0
      %v326 = vmax.f32 %v308, 0.0
      %v327 = vmax.f32 %v310, 0.0
      %v328 = vmax.f32 %v314, 0.0
      %v329 = vmax.f32 %v316, 0.0
      %v330 = vmax.f32 %v320, 0.0
      %v331 = vmax.f32 %v322, 0.0
      %v332 = vld [vmem:[%s2] sm:$0xff]
      %vm333 = vcmask 261120
      %v335 = vsel %vm333, %v332, 0
      %337 = vmatprep.subr.mxu0 %v325
      %338 = vmatpush1.msra.mxu0 %v324
      %339 = vmatprep.subr.mxu0 %v327
      %340 = vmatpush1.msra.mxu0 %v326
      %341 = vmatprep.subr.mxu0 %v329
      %342 = vmatpush1.msra.mxu0 %v328
      %343 = vmatprep.subr.mxu0 %v331
      %344 = vmatpush1.msra.mxu0 %v330
      %345 = vmatprep.subr.mxu0 0.0
      %346 = vmatpush1.msra.mxu0 0.0
      %347 = vmatprep.subr.mxu0 0.0
      %348 = vmatpush1.msra.mxu0 0.0
      %349 = vmatprep.subr.mxu0 0.0
      %350 = vmatpush1.msra.mxu0 0.0
      %351 = vmatprep.subr.mxu0 0.0
      %352 = vmatpush1.msra.mxu0 0.0
      %353 = vmatprep.subr.mxu0 0.0
      %354 = vmatpush1.msra.mxu0 0.0
      %355 = vmatprep.subr.mxu0 0.0
      %356 = vmatpush1.msra.mxu0 0.0
      %357 = vmatprep.subr.mxu0 0.0
      %358 = vmatpush1.msra.mxu0 0.0
      %359 = vmatprep.subr.mxu0 0.0
      %360 = vmatpush1.msra.mxu0 0.0
      %361 = vmatprep.subr.mxu0 0.0
      %362 = vmatpush1.msra.mxu0 0.0
      %363 = vmatprep.subr.mxu0 0.0
      %364 = vmatpush1.msra.mxu0 0.0
      %365 = vmatprep.subr.mxu0 0.0
      %366 = vmatpush1.msra.mxu0 0.0
      %367 = vmatprep.subr.mxu0 0.0
      %368 = vmatpush1.msra.mxu0 0.0
      %369 = vmatprep.subr.mxu0 0.0
      %370 = vmatpush1.msra.mxu0 0.0
      %371 = vmatprep.subr.mxu0 0.0
      %372 = vmatpush1.msra.mxu0 0.0
      %373 = vmatprep.subr.mxu0 0.0
      %374 = vmatpush1.msra.mxu0 0.0
      %375 = vmatprep.subr.mxu0 0.0
      %376 = vmatpush1.msra.mxu0 0.0
      %377 = vmatprep.subr.mxu0 0.0
      %378 = vmatpush1.msra.mxu0 0.0
      %379 = vmatprep.subr.mxu0 0.0
      %380 = vmatpush1.msra.mxu0 0.0
      %381 = vmatprep.subr.mxu0 0.0
      %382 = vmatpush1.msra.mxu0 0.0
      %383 = vmatprep.subr.mxu0 0.0
      %384 = vmatpush1.msra.mxu0 0.0
      %385 = vmatprep.subr.mxu0 0.0
      %386 = vmatpush1.msra.mxu0 0.0
      %387 = vmatprep.subr.mxu0 0.0
      %388 = vmatpush1.msra.mxu0 0.0
      %389 = vmatprep.subr.mxu0 0.0
      %390 = vmatpush1.msra.mxu0 0.0
      %391 = vmatprep.subr.mxu0 0.0
      %392 = vmatpush1.msra.mxu0 0.0
      %393 = vmatprep.subr.mxu0 0.0
      %394 = vmatpush1.msra.mxu0 0.0
      %395 = vmatprep.subr.mxu0 0.0
      %396 = vmatpush1.msra.mxu0 0.0
      %397 = vmatprep.subr.mxu0 0.0
      %398 = vmatpush1.msra.mxu0 0.0
      %399 = vmatprep.subr.mxu0 0.0
      %400 = vmatpush1.msra.mxu0 0.0
      %401 = vmatprep.mubr.f32.mxu0 0.0
      %402 = vmatmul.mubr.f32.gmra.mrb[0].mxu0 %v335
      %v403 = vpop.f32.mrb[0].mxu0
      %v404 = vadd.f32 0.0, %v403
      %v405 = vpop.f32.mrb[0].mxu0
      %v406 = vadd.f32 0.0, %v405
      %407 = vdwg.mxu0
      %408 = vst [vmem:[%s208] sm:$0xff] %v404
      %409 = vst [vmem:[%s208 + $0x8] sm:$0xff] %v406
      %s410 = smul.u32 2, %s19
      %p411 = scmp.lt.s32.totalorder %s18, 1
      %s412 = scalar_select %p411, %s18, 1
      %p413 = scmp.lt.s32.totalorder %s410, 1
      %s414 = scalar_select %p413, %s410, 1
      %s415 = smul.addr %s412, 2
      %s416 = sadd.s32 %s414, %s415
      %s417 = smul.addr %s416, 8
      %s418 = scalar_lea.vmem %s3, %s417
      // Predicated region
      $region33: #{test_adapter_forward.1} parent=31 // pred_check
        %p419 = pneg %p116
      $region34: #{test_adapter_forward.1} parent=31 // pred_check_branch
        %421 = sbr.rel (%p419) target = $region36
      $region35: #{test_adapter_forward.1} parent=31 // pred_region
        %s422 = smul.u32 2, %s19
      $region36: #{test_adapter_forward.1} parent=31 // pred_fallthru
        _
    $region32: #{test_adapter_forward.1} parent=5 // pred_fallthru
      _
    %p423 = scmp.le.s32.totalorder 2, %s9
    // Predicated region
    $region37: #{test_adapter_forward.1} parent=5 // pred_check
      %p424 = pneg %p423
    $region38: #{test_adapter_forward.1} parent=5 // pred_check_branch
      %426 = sbr.rel (%p424) target = $region40
    $region39: #{test_adapter_forward.1} parent=5 // pred_region
      %s427 = ssub.s32 %s9, 2
      // Predicated region
      $region41: #{test_adapter_forward.1} parent=39 // pred_check
        %p428 = pneg %p122
      $region42: #{test_adapter_forward.1} parent=39 // pred_check_branch
        %430 = sbr.rel (%p428) target = $region44
      $region43: #{test_adapter_forward.1} parent=39 // pred_region
        %s431 = smul.u32 2, %s21
        %p432 = scmp.lt.s32.totalorder %s20, 1
        %s433 = scalar_select %p432, %s20, 1
        %p434 = scmp.lt.s32.totalorder %s431, 1
        %s435 = scalar_select %p434, %s431, 1
        %s436 = smul.addr %s433, 2
        %s437 = sadd.s32 %s435, %s436
        %s438 = smul.addr %s437, 8
        %s439 = scalar_lea.vmem %s3, %s438
      $region44: #{test_adapter_forward.1} parent=39 // pred_fallthru
        _
    $region40: #{test_adapter_forward.1} parent=5 // pred_fallthru
      _
  $region6: #{test_adapter_forward.1} parent=0 // loop_footer
    %s13 = sadd.s32 1, %s9
  $region7: #{test_adapter_forward.1} parent=0 // loop_footer_branch
    %8 = sbr.rel target = $region3
  $region8: #{test_adapter_forward.1} parent=0 // loop_exit
    _

</llo_original>
